<compile_context>
chip_gen: v6e
topology: v6e:2x2x1
jax: 0.10.0
libtpu: 0.0.40
codegen_flags: <defaults>
</compile_context>

<pallas_src>
import numpy as np
import jax
import jax.numpy as jnp
from jax.experimental import pallas as pl
from jax.experimental.pallas import tpu as pltpu

# ~2 MiB per block: with double-buffered (aliased) in+out this stays far below
# v7x's 32 MiB scoped / 64 MiB physical VMEM while saturating HBM bandwidth.
_TARGET_BLOCK_BYTES = 2 * 1024 * 1024


def _identity_copy_kernel(x_ref, o_ref):
    # Full-tile identity copy; with aliased buffers this is the cheapest
    # possible materialization of the flattened view.
    o_ref[...] = x_ref[...]


def _pick_slab(total_elems):
    """Pick a lane/sublane-dense 2-D view (rows, cols) of the flat buffer.

    Prefers cols as a wide multiple of 128 (lane-dense, unmasked stores) with
    rows a multiple of 8 (full sublane occupancy).  Returns None if the total
    element count is not a multiple of 128.
    """
    fallback = None
    for cols in (2048, 1024, 512, 256, 128):
        if total_elems % cols:
            continue
        rows = total_elems // cols
        if rows % 8 == 0:
            return rows, cols
        if fallback is None:
            fallback = (rows, cols)
    return fallback


def flatten(x: jax.Array, materialize: bool = True) -> jax.Array:
    """Pallas equivalent of Flatten.forward: (N, ...) -> (N, prod(...))."""
    n = x.shape[0]
    feat = int(np.prod(x.shape[1:]))

    # Row-major rank collapse == torch .view(-1, feat).  Pure metadata.
    flat = jnp.reshape(x, (n, feat))
    if not materialize:
        # Recommended fast path: no kernel, no HBM traffic.
        return flat

    total = n * feat
    itemsize = jnp.dtype(x.dtype).itemsize
    slab = _pick_slab(total)

    if slab is None:
        # Not 128-divisible: single full-array block (block == array dims is
        # always legal), one grid step, aliased in/out buffer.
        return pl.pallas_call(
            _identity_copy_kernel,
            out_shape=jax.ShapeDtypeStruct((n, feat), x.dtype),
            in_specs=[pl.BlockSpec((n, feat), lambda: (0, 0))],
            out_specs=pl.BlockSpec((n, feat), lambda: (0, 0)),
            input_output_aliases={0: 0},
        )(flat)

    rows, cols = slab
    # Block rows: multiple of 8 sublanes, sized for ~_TARGET_BLOCK_BYTES.
    target_rows = max(8, (_TARGET_BLOCK_BYTES // (cols * itemsize)) // 8 * 8)
    block_rows = min(target_rows, rows)

    slab_in = jnp.reshape(flat, (rows, cols))  # metadata only
    grid = (pl.cdiv(rows, block_rows),)
    out_slab = pl.pallas_call(
        _identity_copy_kernel,
        out_shape=jax.ShapeDtypeStruct((rows, cols), x.dtype),
        grid=grid,
        in_specs=[pl.BlockSpec((block_rows, cols), lambda i: (i, 0))],
        out_specs=pl.BlockSpec((block_rows, cols), lambda i: (i, 0)),
        input_output_aliases={0: 0},
        compiler_params=pltpu.CompilerParams(
            dimension_semantics=("parallel",),
        ),
    )(slab_in)
    return jnp.reshape(out_slab, (n, feat))  # metadata only


if __name__ == "__main__":
    # Flatten has no parameters; just build a deterministic NCHW input.
    key = jax.random.PRNGKey(0)
    N, C, H, W = 2, 4, 16, 16
    x = jax.random.normal(key, (N, C, H, W), dtype=jnp.float32)

    # Run the Pallas-materialized path once.
    out = flatten(x, materialize=True)
    out = jax.block_until_ready(out)

    # Reference semantics: x.view(-1, C*H*W) == row-major reshape.
    ref = np.asarray(x).reshape(N, C * H * W)
    assert out.shape == (N, C * H * W), out.shape
    assert out.dtype == x.dtype
    np.testing.assert_array_equal(np.asarray(out), ref)

    # Also verify the recommended metadata-only fast path.
    out_fast = jax.block_until_ready(flatten(x, materialize=False))
    np.testing.assert_array_equal(np.asarray(out_fast), ref)

    print("KERNEL_OK")
</pallas_src>

<mosaic_0001>
module attributes {stable_mosaic.version = 11 : i64} {
  func.func @_identity_copy_kernel(%arg0: i32, %arg1: memref<8x256xf32, #tpu.memory_space<vmem>>, %arg2: memref<8x256xf32, #tpu.memory_space<vmem>>) attributes {dimension_semantics = [#tpu.dimension_semantics<parallel>], iteration_bounds = array<i64: 1>, scalar_prefetch = 0 : i64, scratch_operands = 0 : i64, tpu.core_type = #tpu.core_type<tc>, window_params = [{transform_indices = @transform_0, window_bounds = array<i64: 8, 256>}, {transform_indices = @transform_1, window_bounds = array<i64: 8, 256>}]} {
    %c0 = arith.constant 0 : index
    %c0_0 = arith.constant 0 : index
    %0 = vector.load %arg1[%c0, %c0_0] : memref<8x256xf32, #tpu.memory_space<vmem>>, vector<8x256xf32>
    %c0_1 = arith.constant 0 : index
    %c0_2 = arith.constant 0 : index
    %1 = vector.load %arg2[%c0_1, %c0_2] : memref<8x256xf32, #tpu.memory_space<vmem>>, vector<8x256xf32>
    tpu.vector_store %arg2[%c0_1, %c0_2], %0 {strides = array<i32>} : memref<8x256xf32, #tpu.memory_space<vmem>>, vector<8x256xf32>,
    return
  }
  func.func @transform_0(%arg0: i32) -> (i32, i32) {
    %c0_i32 = arith.constant 0 : i32
    %c0_i32_0 = arith.constant 0 : i32
    return %arg0, %c0_i32 : i32, i32
  }
  func.func @transform_1(%arg0: i32) -> (i32, i32) {
    %c0_i32 = arith.constant 0 : i32
    %c0_i32_0 = arith.constant 0 : i32
    return %arg0, %c0_i32 : i32, i32
  }
}

</mosaic_0001>

<llo_original>
// kernel: tpu_custom_call.1
$region0: #{tpu_custom_call.1}
  #allocation0 [shape = 'u32[]', space=smem, size = 0x4, offset = 0x4, fixed_abs, tag = 'smem constant byte address 0x4 - core index']
  #allocation1 [shape = 'u32[144,128]{1,0:T(1,128)}', space=vmem, size = 0x12000, scoped, tag = 'internal scratch']
  %s0 = inlined_call_operand.hbm [shape: f32[8,256], index: 0, kind: input, shape index: {}, may-alias: {0,1}]
  %s1 = inlined_call_operand.hbm [shape: f32[8,256], index: 1, kind: output, shape index: {}, may-alias: {0,1}]
  %s2 = sld [smem:[#allocation0]]
  $region18: #{tpu_custom_call.1} parent=0
    _
  %s4 = ssub.s32 1, %s2
  %s5 = scalar_select 0, %s4, %s2
  $region1: #{tpu_custom_call.1} parent=0
    #allocation2 [shape = 'u8[8192]{0}', space=vmem, size = 0x2000, scoped, tag = 'input window, operand 0, single buffered']
    #allocation3 [shape = 's32[1]{0}', space=sflag, size = 0x4, scoped, tag = 'scoped memory for tpu_custom_call.1']
    #allocation4 [shape = 's32[1]{0}', space=sflag, size = 0x4, scoped, tag = 'scoped memory for tpu_custom_call.1']
    #allocation5 [shape = 'u8[8192]{0}', space=vmem, size = 0x2000, scoped, tag = 'output window, operand 0, single buffered']
    %6 = vsyncpa [#allocation3], 0
    %7 = vsyncpa [#allocation4], 0
    // Predicated region
    $region2: #{tpu_custom_call.1} parent=1 // pred_check
      _
    $region3: #{tpu_custom_call.1} parent=1 // pred_check_branch
      %9 = sbr.rel (0) target = $region5
    $region4: #{tpu_custom_call.1} parent=1 // pred_region
      %s11 = ssub.s32 256, 256
      %12 = vsyncadd [#allocation3], %s11
      %s14 = sshll.u32 [#allocation2], 4
      %s15 = int_to_ptr.vmem [resolvable:$true] %s14
      %17 = dma.hbm_to_vmem [thread:$0]  %s0, 256, %s15, [#allocation3]
    $region5: #{tpu_custom_call.1} parent=1 // pred_fallthru
      _
    // Predicated region
    $region6: #{tpu_custom_call.1} parent=1 // pred_check
      _
    $region7: #{tpu_custom_call.1} parent=1 // pred_check_branch
      %19 = sbr.rel (0) target = $region9
    $region8: #{tpu_custom_call.1} parent=1 // pred_region
      %20 = dma.done [#allocation3], 256
    $region9: #{tpu_custom_call.1} parent=1 // pred_fallthru
      _
    %v21 = vld [vmem:[#allocation2] sm:$0xff]
    %v22 = vld [vmem:[#allocation2 + $0x8] sm:$0xff]
    %23 = vst [vmem:[#allocation5] sm:$0xff] %v21
    %24 = vst [vmem:[#allocation5 + $0x8] sm:$0xff] %v22
    // Predicated region
    $region10: #{tpu_custom_call.1} parent=1 // pred_check
      _
    $region11: #{tpu_custom_call.1} parent=1 // pred_check_branch
      %26 = sbr.rel (0) target = $region13
    $region12: #{tpu_custom_call.1} parent=1 // pred_region
      %s28 = ssub.s32 256, 256
      %29 = vsyncadd [#allocation4], %s28
      %s31 = sshll.u32 [#allocation5], 4
      %s32 = int_to_ptr.vmem [resolvable:$true] %s31
      %34 = dma.vmem_to_hbm [thread:$0]  %s32, 256, %s1, [#allocation4]
    $region13: #{tpu_custom_call.1} parent=1 // pred_fallthru
      _
    // Predicated region
    $region14: #{tpu_custom_call.1} parent=1 // pred_check
      _
    $region15: #{tpu_custom_call.1} parent=1 // pred_check_branch
      %36 = sbr.rel (0) target = $region17
    $region16: #{tpu_custom_call.1} parent=1 // pred_region
      %37 = dma.done [#allocation4], 256
    $region17: #{tpu_custom_call.1} parent=1 // pred_fallthru
      _
    %38 = vsyncpa [#allocation3], 1
    %39 = vsyncpa [#allocation4], 1

</llo_original>
